<compile_context>
chip_gen: v7x
topology: tpu7x:2x2x1
jax: 0.10.0
libtpu: 0.0.40
codegen_flags: <defaults>
</compile_context>

<pallas_src>
import functools

import numpy as np
import jax
import jax.numpy as jnp
from jax import lax
from jax.experimental import pallas as pl
from jax.experimental.pallas import tpu as pltpu


_LANE = 128
# Total live VMEM target per grid step (input dbuf + halo dbuf + scratch + output
# dbuf).  Conservative for v7x's 64 MiB VMEM; can be raised ~4x on v5e/v6e.
_VMEM_BLOCK_BUDGET = 16 * 1024 * 1024


def make_kernel(k):
    k = jnp.asarray(k, dtype=jnp.float32)
    if k.ndim == 1:
        k = k[None, :] * k[:, None]
    k = k / jnp.sum(k)
    return k


def _separable_taps(kernel_np):
    """Factor a separable 2D FIR into 1D row/col taps, already flipped to correlation form."""
    k = np.asarray(kernel_np, dtype=np.float64)
    kv = k.sum(axis=1)
    kw = k.sum(axis=0) / k.sum()
    if not np.allclose(np.outer(kv, kw), k, rtol=1e-5, atol=1e-6):
        # TODO(synk): non-separable 2D FIR kernels would need a direct 16-tap path.
        raise NotImplementedError("Pallas Downsample currently requires a separable blur kernel")
    # upfirdn2d convolves with the *flipped* kernel; bake the flip into the taps.
    return tuple(float(v) for v in kv[::-1]), tuple(float(v) for v in kw[::-1])


def _build_fir_kernel(th, wo, kvf, kwf):
    """Kernel body with all sizes/taps closed over as compile-time constants."""
    kv0, kv1, kv2, kv3 = kvf
    kw0, kw1, kw2, kw3 = kwf

    def kernel(mref, href, oref, tmp_ref):
        # mref:    (th, 2, Wp, bl)  main row-pairs of the (Hp/2, 2, Wp, B) phase-split input
        # href:    (1,  2, Wp, bl)  one-row-pair halo (= first row pair of the next block)
        # oref:    (th, Wo, bl)     output block, B on lanes (dense stores)
        # tmp_ref: (th, Wp, bl)     VMEM scratch holding the vertical-pass result
        #
        # Vertical 4-tap pass: tmp[h] = sum_i kv[i] * xpad[2h + i]
        #   xpad[2h+0] = mref[h, 0], xpad[2h+1] = mref[h, 1],
        #   xpad[2h+2] = mref[h+1, 0], xpad[2h+3] = mref[h+1, 1]  (halo row when h == th-1)
        if th > 1:
            tmp_ref[:th - 1] = (kv0 * mref[:th - 1, 0] + kv1 * mref[:th - 1, 1]
                                + kv2 * mref[1:, 0] + kv3 * mref[1:, 1])
        tmp_ref[th - 1:] = (kv0 * mref[th - 1:, 0] + kv1 * mref[th - 1:, 1]
                            + kv2 * href[:, 0] + kv3 * href[:, 1])
        # Horizontal 4-tap pass, stride-2 along the sublane (W) axis:
        #   out[h, wo] = sum_j kw[j] * tmp[h, 2*wo + j]
        oref[...] = (kw0 * tmp_ref[:, pl.ds(0, wo, stride=2), :]
                     + kw1 * tmp_ref[:, pl.ds(1, wo, stride=2), :]
                     + kw2 * tmp_ref[:, pl.ds(2, wo, stride=2), :]
                     + kw3 * tmp_ref[:, pl.ds(3, wo, stride=2), :]).astype(oref.dtype)

    return kernel


@functools.partial(jax.jit, static_argnames=("kvf", "kwf", "factor", "pad"))
def _downsample_pallas(x, *, kvf, kwf, factor, pad):
    """upfirdn2d(x, outer(kv, kw), up=1, down=factor, pad=pad) for NCHW x."""
    n, c, h, w = x.shape
    kh, kw_ = len(kvf), len(kwf)
    pad0, pad1 = pad
    down = factor
    assert down == 2 and kh == 4 and kw_ == 4, "this Pallas path assumes factor=2 with a 4x4 FIR"

    ho = (h + pad0 + pad1 - kh) // down + 1
    wo = (w + pad0 + pad1 - kw_) // down + 1
    b = n * c

    # ---- single layout-plumbing pass: NCHW -> (Hp, Wp, B) with the zero-pad fused ----
    xb = x.reshape(b, h, w).astype(jnp.float32).transpose(1, 2, 0)          # (H, W, B)
    hp = h + pad0 + pad1
    wp = w + pad0 + pad1
    extra = hp % 2                                   # keep the 2-row phase split exact
    xpad = jnp.pad(xb, ((pad0, pad1 + extra), (pad0, pad1), (0, 0)))
    hp += extra
    hh = hp // 2
    # Metadata-only split of the row axis into (row pair, H-phase): no data movement.
    xph = xpad.reshape(hh, 2, wp, b)

    # ---- VMEM-budgeted block sizes ----
    bl = b if b <= _LANE else _LANE * min(max(b // _LANE, 1), 4)   # full B or multiple of 128

    def vmem_bytes(th_, bl_):
        return 4 * bl_ * (2 * th_ * 2 * wp      # main input block, double-buffered
                          + 2 * 2 * wp          # halo block, double-buffered
                          + th_ * wp            # vertical-pass scratch
                          + 2 * th_ * wo)       # output block, double-buffered

    divisors = [d for d in range(1, ho + 1) if ho % d == 0]
    th = max([d for d in divisors if vmem_bytes(d, bl) <= _VMEM_BLOCK_BUDGET] or [1])
    if vmem_bytes(th, bl) > _VMEM_BLOCK_BUDGET and bl > _LANE:
        bl = _LANE
        th = max([d for d in divisors if vmem_bytes(d, bl) <= _VMEM_BLOCK_BUDGET] or [1])

    grid = (pl.cdiv(b, bl), ho // th)   # (lane tiles, output-row tiles): both independent

    out = pl.pallas_call(
        _build_fir_kernel(th, wo, kvf, kwf),
        out_shape=jax.ShapeDtypeStruct((ho, wo, b), x.dtype),
        grid=grid,
        in_specs=[
            # Main rows: output rows [hi*th, (hi+1)*th) read xph rows [hi*th, hi*th + th].
            pl.BlockSpec((th, 2, wp, bl), lambda bi, hi: (hi, 0, 0, bi)),
            # +1 row-pair halo: the first row pair of the next block.  Always in range,
            # since Hh >= Ho + 1 and th divides Ho.
            pl.BlockSpec((1, 2, wp, bl), lambda bi, hi: (th * (hi + 1), 0, 0, bi)),
        ],
        out_specs=pl.BlockSpec((th, wo, bl), lambda bi, hi: (hi, 0, bi)),
        scratch_shapes=[pltpu.VMEM((th, wp, bl), jnp.float32)],
        compiler_params=pltpu.CompilerParams(
            dimension_semantics=("parallel", "parallel"),
            vmem_limit_bytes=int(max(32 * 1024 * 1024,
                                     min(int(1.5 * vmem_bytes(th, bl)), 96 * 1024 * 1024))),
        ),
    )(xph, xph)

    # Back to NCHW (layout plumbing over the 4x-smaller output).
    return out.transpose(2, 0, 1).reshape(n, c, ho, wo)


class Downsample:
    """JAX/Pallas port of model/stylegan_ops/style_function.py::Downsample (forward only)."""

    def __init__(self, kernel, factor=2):
        self.factor = factor
        k = make_kernel(kernel)
        self.kernel = k                              # buffer parity with the torch module
        p = k.shape[0] - factor
        self.pad = ((p + 1) // 2, p // 2)
        self._kvf, self._kwf = _separable_taps(np.asarray(k))

    def __call__(self, x):
        return _downsample_pallas(x, kvf=self._kvf, kwf=self._kwf,
                                  factor=self.factor, pad=self.pad)


def downsample_ref(x, kernel, factor, pad):
    """Independent pure-JAX reference (depthwise strided conv with the flipped kernel)."""
    n, c, h, w = x.shape
    kh, kw = kernel.shape
    wk = jnp.flip(kernel, (0, 1)).astype(jnp.float32)
    rhs = jnp.broadcast_to(wk[None, None], (c, 1, kh, kw))
    return lax.conv_general_dilated(
        x.astype(jnp.float32), rhs,
        window_strides=(factor, factor),
        padding=((pad[0], pad[1]), (pad[0], pad[1])),
        dimension_numbers=("NCHW", "OIHW", "NCHW"),
        feature_group_count=c,
    )


if __name__ == "__main__":
    key = jax.random.PRNGKey(0)
    x = jax.random.normal(key, (2, 4, 16, 16), dtype=jnp.float32)  # NCHW

    ds = Downsample([1, 3, 3, 1], factor=2)
    y = ds(x)
    jax.block_until_ready(y)

    assert y.shape == (2, 4, 8, 8), y.shape
    y_ref = downsample_ref(x, ds.kernel, ds.factor, ds.pad)
    np.testing.assert_allclose(np.asarray(y), np.asarray(y_ref), rtol=1e-5, atol=1e-5)

    print("KERNEL_OK")
</pallas_src>

<mosaic_0001>
module attributes {stable_mosaic.version = 11 : i64} {
  func.func @kernel(%arg0: i32, %arg1: i32, %arg2: memref<8x2x18x8xf32, #tpu.memory_space<vmem>>, %arg3: memref<1x2x18x8xf32, #tpu.memory_space<vmem>>, %arg4: memref<8x8x8xf32, #tpu.memory_space<vmem>>, %arg5: memref<8x18x8xf32, #tpu.memory_space<vmem>>) attributes {dimension_semantics = [#tpu.dimension_semantics<parallel>, #tpu.dimension_semantics<parallel>], iteration_bounds = array<i64: 1, 1>, scalar_prefetch = 0 : i64, scratch_operands = 1 : i64, tpu.core_type = #tpu.core_type<tc>, window_params = [{transform_indices = @transform_0, window_bounds = array<i64: 8, 2, 18, 8>}, {transform_indices = @transform_1, window_bounds = array<i64: 1, 2, 18, 8>}, {transform_indices = @transform_2, window_bounds = array<i64: 8, 8, 8>}]} {
    %c0 = arith.constant 0 : index
    %c0_0 = arith.constant 0 : index
    %c0_1 = arith.constant 0 : index
    %c0_2 = arith.constant 0 : index
    %0 = vector.load %arg2[%c0, %c0_0, %c0_1, %c0_2] : memref<8x2x18x8xf32, #tpu.memory_space<vmem>>, vector<7x1x18x8xf32>
    %1 = vector.shape_cast %0 : vector<7x1x18x8xf32> to vector<7x18x8xf32>
    %cst = arith.constant 1.250000e-01 : f32
    %2 = vector.broadcast %cst : f32 to vector<7x18x8xf32>
    %3 = arith.mulf %2, %1 : vector<7x18x8xf32>
    %c0_3 = arith.constant 0 : index
    %c1 = arith.constant 1 : index
    %c0_4 = arith.constant 0 : index
    %c0_5 = arith.constant 0 : index
    %4 = vector.load %arg2[%c0_3, %c1, %c0_4, %c0_5] : memref<8x2x18x8xf32, #tpu.memory_space<vmem>>, vector<7x1x18x8xf32>
    %5 = vector.shape_cast %4 : vector<7x1x18x8xf32> to vector<7x18x8xf32>
    %cst_6 = arith.constant 3.750000e-01 : f32
    %6 = vector.broadcast %cst_6 : f32 to vector<7x18x8xf32>
    %7 = arith.mulf %6, %5 : vector<7x18x8xf32>
    %8 = arith.addf %3, %7 : vector<7x18x8xf32>
    %c1_7 = arith.constant 1 : index
    %c0_8 = arith.constant 0 : index
    %c0_9 = arith.constant 0 : index
    %c0_10 = arith.constant 0 : index
    %9 = vector.load %arg2[%c1_7, %c0_8, %c0_9, %c0_10] : memref<8x2x18x8xf32, #tpu.memory_space<vmem>>, vector<7x1x18x8xf32>
    %10 = vector.shape_cast %9 : vector<7x1x18x8xf32> to vector<7x18x8xf32>
    %cst_11 = arith.constant 3.750000e-01 : f32
    %11 = vector.broadcast %cst_11 : f32 to vector<7x18x8xf32>
    %12 = arith.mulf %11, %10 : vector<7x18x8xf32>
    %13 = arith.addf %8, %12 : vector<7x18x8xf32>
    %c1_12 = arith.constant 1 : index
    %c1_13 = arith.constant 1 : index
    %c0_14 = arith.constant 0 : index
    %c0_15 = arith.constant 0 : index
    %14 = vector.load %arg2[%c1_12, %c1_13, %c0_14, %c0_15] : memref<8x2x18x8xf32, #tpu.memory_space<vmem>>, vector<7x1x18x8xf32>
    %15 = vector.shape_cast %14 : vector<7x1x18x8xf32> to vector<7x18x8xf32>
    %cst_16 = arith.constant 1.250000e-01 : f32
    %16 = vector.broadcast %cst_16 : f32 to vector<7x18x8xf32>
    %17 = arith.mulf %16, %15 : vector<7x18x8xf32>
    %18 = arith.addf %13, %17 : vector<7x18x8xf32>
    %c0_17 = arith.constant 0 : index
    %c0_18 = arith.constant 0 : index
    %c0_19 = arith.constant 0 : index
    %19 = vector.load %arg5[%c0_17, %c0_18, %c0_19] : memref<8x18x8xf32, #tpu.memory_space<vmem>>, vector<7x18x8xf32>
    tpu.vector_store %arg5[%c0_17, %c0_18, %c0_19], %18 {strides = array<i32>} : memref<8x18x8xf32, #tpu.memory_space<vmem>>, vector<7x18x8xf32>,
    %c7 = arith.constant 7 : index
    %c0_20 = arith.constant 0 : index
    %c0_21 = arith.constant 0 : index
    %c0_22 = arith.constant 0 : index
    %20 = vector.load %arg2[%c7, %c0_20, %c0_21, %c0_22] : memref<8x2x18x8xf32, #tpu.memory_space<vmem>>, vector<1x1x18x8xf32>
    %21 = vector.shape_cast %20 : vector<1x1x18x8xf32> to vector<1x18x8xf32>
    %cst_23 = arith.constant 1.250000e-01 : f32
    %22 = vector.broadcast %cst_23 : f32 to vector<1x18x8xf32>
    %23 = arith.mulf %22, %21 : vector<1x18x8xf32>
    %c7_24 = arith.constant 7 : index
    %c1_25 = arith.constant 1 : index
    %c0_26 = arith.constant 0 : index
    %c0_27 = arith.constant 0 : index
    %24 = vector.load %arg2[%c7_24, %c1_25, %c0_26, %c0_27] : memref<8x2x18x8xf32, #tpu.memory_space<vmem>>, vector<1x1x18x8xf32>
    %25 = vector.shape_cast %24 : vector<1x1x18x8xf32> to vector<1x18x8xf32>
    %cst_28 = arith.constant 3.750000e-01 : f32
    %26 = vector.broadcast %cst_28 : f32 to vector<1x18x8xf32>
    %27 = arith.mulf %26, %25 : vector<1x18x8xf32>
    %28 = arith.addf %23, %27 : vector<1x18x8xf32>
    %c0_29 = arith.constant 0 : index
    %c0_30 = arith.constant 0 : index
    %c0_31 = arith.constant 0 : index
    %c0_32 = arith.constant 0 : index
    %29 = vector.load %arg3[%c0_29, %c0_30, %c0_31, %c0_32] : memref<1x2x18x8xf32, #tpu.memory_space<vmem>>, vector<1x1x18x8xf32>
    %30 = vector.shape_cast %29 : vector<1x1x18x8xf32> to vector<1x18x8xf32>
    %cst_33 = arith.constant 3.750000e-01 : f32
    %31 = vector.broadcast %cst_33 : f32 to vector<1x18x8xf32>
    %32 = arith.mulf %31, %30 : vector<1x18x8xf32>
    %33 = arith.addf %28, %32 : vector<1x18x8xf32>
    %c0_34 = arith.constant 0 : index
    %c1_35 = arith.constant 1 : index
    %c0_36 = arith.constant 0 : index
    %c0_37 = arith.constant 0 : index
    %34 = vector.load %arg3[%c0_34, %c1_35, %c0_36, %c0_37] : memref<1x2x18x8xf32, #tpu.memory_space<vmem>>, vector<1x1x18x8xf32>
    %35 = vector.shape_cast %34 : vector<1x1x18x8xf32> to vector<1x18x8xf32>
    %cst_38 = arith.constant 1.250000e-01 : f32
    %36 = vector.broadcast %cst_38 : f32 to vector<1x18x8xf32>
    %37 = arith.mulf %36, %35 : vector<1x18x8xf32>
    %38 = arith.addf %33, %37 : vector<1x18x8xf32>
    %c7_39 = arith.constant 7 : index
    %c0_40 = arith.constant 0 : index
    %c0_41 = arith.constant 0 : index
    %39 = vector.load %arg5[%c7_39, %c0_40, %c0_41] : memref<8x18x8xf32, #tpu.memory_space<vmem>>, vector<1x18x8xf32>
    tpu.vector_store %arg5[%c7_39, %c0_40, %c0_41], %38 {strides = array<i32>} : memref<8x18x8xf32, #tpu.memory_space<vmem>>, vector<1x18x8xf32>,
    %c0_42 = arith.constant 0 : index
    %c0_43 = arith.constant 0 : index
    %c0_44 = arith.constant 0 : index
    %40 = tpu.strided_load %arg5[%c0_42, %c0_43, %c0_44] {strides = array<i32: 1, 2, 1>} : memref<8x18x8xf32, #tpu.memory_space<vmem>>, vector<8x8x8xf32>
    %cst_45 = arith.constant 1.250000e-01 : f32
    %41 = vector.broadcast %cst_45 : f32 to vector<8x8x8xf32>
    %42 = arith.mulf %41, %40 : vector<8x8x8xf32>
    %c0_46 = arith.constant 0 : index
    %c1_47 = arith.constant 1 : index
    %c0_48 = arith.constant 0 : index
    %43 = tpu.strided_load %arg5[%c0_46, %c1_47, %c0_48] {strides = array<i32: 1, 2, 1>} : memref<8x18x8xf32, #tpu.memory_space<vmem>>, vector<8x8x8xf32>
    %cst_49 = arith.constant 3.750000e-01 : f32
    %44 = vector.broadcast %cst_49 : f32 to vector<8x8x8xf32>
    %45 = arith.mulf %44, %43 : vector<8x8x8xf32>
    %46 = arith.addf %42, %45 : vector<8x8x8xf32>
    %c0_50 = arith.constant 0 : index
    %c2 = arith.constant 2 : index
    %c0_51 = arith.constant 0 : index
    %47 = tpu.strided_load %arg5[%c0_50, %c2, %c0_51] {strides = array<i32: 1, 2, 1>} : memref<8x18x8xf32, #tpu.memory_space<vmem>>, vector<8x8x8xf32>
    %cst_52 = arith.constant 3.750000e-01 : f32
    %48 = vector.broadcast %cst_52 : f32 to vector<8x8x8xf32>
    %49 = arith.mulf %48, %47 : vector<8x8x8xf32>
    %50 = arith.addf %46, %49 : vector<8x8x8xf32>
    %c0_53 = arith.constant 0 : index
    %c3 = arith.constant 3 : index
    %c0_54 = arith.constant 0 : index
    %51 = tpu.strided_load %arg5[%c0_53, %c3, %c0_54] {strides = array<i32: 1, 2, 1>} : memref<8x18x8xf32, #tpu.memory_space<vmem>>, vector<8x8x8xf32>
    %cst_55 = arith.constant 1.250000e-01 : f32
    %52 = vector.broadcast %cst_55 : f32 to vector<8x8x8xf32>
    %53 = arith.mulf %52, %51 : vector<8x8x8xf32>
    %54 = arith.addf %50, %53 : vector<8x8x8xf32>
    %c0_56 = arith.constant 0 : index
    %c0_57 = arith.constant 0 : index
    %c0_58 = arith.constant 0 : index
    %55 = vector.load %arg4[%c0_56, %c0_57, %c0_58] : memref<8x8x8xf32, #tpu.memory_space<vmem>>, vector<8x8x8xf32>
    tpu.vector_store %arg4[%c0_56, %c0_57, %c0_58], %54 {strides = array<i32>} : memref<8x8x8xf32, #tpu.memory_space<vmem>>, vector<8x8x8xf32>,
    return
  }
  func.func @transform_0(%arg0: i32, %arg1: i32) -> (i32, i32, i32, i32) {
    %c0_i32 = arith.constant 0 : i32
    %c0_i32_0 = arith.constant 0 : i32
    %c0_i32_1 = arith.constant 0 : i32
    return %arg1, %c0_i32, %c0_i32_0, %arg0 : i32, i32, i32, i32
  }
  func.func @transform_1(%arg0: i32, %arg1: i32) -> (i32, i32, i32, i32) {
    %c1_i32 = arith.constant 1 : i32
    %0 = arith.addi %arg1, %c1_i32 : i32
    %c8_i32 = arith.constant 8 : i32
    %1 = arith.muli %c8_i32, %0 : i32
    %c0_i32 = arith.constant 0 : i32
    %c0_i32_0 = arith.constant 0 : i32
    %c0_i32_1 = arith.constant 0 : i32
    return %1, %c0_i32, %c0_i32_0, %arg0 : i32, i32, i32, i32
  }
  func.func @transform_2(%arg0: i32, %arg1: i32) -> (i32, i32, i32) {
    %c0_i32 = arith.constant 0 : i32
    %c0_i32_0 = arith.constant 0 : i32
    return %arg1, %c0_i32, %arg0 : i32, i32, i32
  }
}

</mosaic_0001>

<llo_original>
// kernel: _downsample_pallas.1
$region0: #{_downsample_pallas.1}
  #allocation0 [shape = 'u32[]', space=smem, size = 0x4, offset = 0x4, fixed_abs, tag = 'smem constant byte address 0x4 - core index']
  #allocation1 [shape = 'u32[144,128]{1,0:T(1,128)}', space=vmem, size = 0x12000, scoped, tag = 'internal scratch']
  #allocation2 [shape = 'f32[8,18,8]{2,1,0:T(8,128)}', space=vmem, size = 0x18000, scoped, tag = 'scratch operand']
  %s0 = inlined_call_operand.vmem [shape: f32[9,2,18,8], index: 0, kind: input, shape index: {}, may-alias: {0,1}]
  %s1 = inlined_call_operand.vmem [shape: f32[9,2,18,8], index: 1, kind: input, shape index: {}, may-alias: {0,1}]
  %s2 = inlined_call_operand.vmem [shape: f32[8,8,8], index: 2, kind: output, shape index: {}]
  %s3 = sld [smem:[#allocation0]]
  $region18: #{_downsample_pallas.1} parent=0
    _
  %s5 = ssub.s32 1, %s3
  %s6 = scalar_select 0, %s5, %s3
  // Predicated region
  $region2: #{_downsample_pallas.1} parent=0 // pred_check
    _
  $region3: #{_downsample_pallas.1} parent=0 // pred_check_branch
    %8 = sbr.rel (0) target = $region5
  $region4: #{_downsample_pallas.1} parent=0 // pred_region
    _
  $region5: #{_downsample_pallas.1} parent=0 // pred_fallthru
    _
  // Predicated region
  $region6: #{_downsample_pallas.1} parent=0 // pred_check
    _
  $region7: #{_downsample_pallas.1} parent=0 // pred_check_branch
    %10 = sbr.rel (0) target = $region9
  $region8: #{_downsample_pallas.1} parent=0 // pred_region
    %s11 = sadd.s32 0, 1
    %s12 = smul.u32 %s11, 8
    %p13 = scmp.lt.s32.totalorder %s12, 8
    %s14 = scalar_select %p13, %s12, 8
    %s15 = smul.addr %s14, 6
    %s16 = smul.addr %s15, 8
    %s17 = scalar_lea.vmem %s1, %s16
    %s18 = sadd.s32 0, 1
    %s19 = smul.u32 %s18, 8
  $region9: #{_downsample_pallas.1} parent=0 // pred_fallthru
    _
  %s20 = sadd.s32 0, 1
  %s21 = smul.u32 %s20, 8
  %p22 = scmp.lt.s32.totalorder %s21, 8
  %s23 = scalar_select %p22, %s21, 8
  %s24 = smul.addr %s23, 6
  %s25 = smul.addr %s24, 8
  %s26 = scalar_lea.vmem %s1, %s25
  %s27 = sadd.s32 0, 1
  %s28 = smul.u32 %s27, 8
  %p29 = scmp.lt.s32.totalorder %s28, 8
  %s30 = scalar_select %p29, %s28, 8
  %s31 = smul.addr %s30, 6
  %s32 = smul.addr %s31, 8
  %s33 = scalar_lea.vmem %s1, %s32
  %s34 = sadd.s32 0, 1
  %s35 = smul.u32 %s34, 8
  %v36 = vld [vmem:[%s0] sm:$0xff]
  %v37 = vld [vmem:[%s0 + $0x8] sm:$0xff]
  %v38 = vld [vmem:[%s0 + $0x10] sm:$0x3]
  %v39 = vld [vmem:[%s0 + $0x30] sm:$0xff]
  %v40 = vld [vmem:[%s0 + $0x38] sm:$0xff]
  %v41 = vld [vmem:[%s0 + $0x40] sm:$0x3]
  %v42 = vld [vmem:[%s0 + $0x60] sm:$0xff]
  %v43 = vld [vmem:[%s0 + $0x68] sm:$0xff]
  %v44 = vld [vmem:[%s0 + $0x70] sm:$0x3]
  %v45 = vld [vmem:[%s0 + $0x90] sm:$0xff]
  %v46 = vld [vmem:[%s0 + $0x98] sm:$0xff]
  %v47 = vld [vmem:[%s0 + $0xa0] sm:$0x3]
  %v48 = vld [vmem:[%s0 + $0xc0] sm:$0xff]
  %v49 = vld [vmem:[%s0 + $0xc8] sm:$0xff]
  %v50 = vld [vmem:[%s0 + $0xd0] sm:$0x3]
  %v51 = vld [vmem:[%s0 + $0xf0] sm:$0xff]
  %v52 = vld [vmem:[%s0 + $0xf8] sm:$0xff]
  %v53 = vld [vmem:[%s0 + $0x100] sm:$0x3]
  %v54 = vld [vmem:[%s0 + $0x120] sm:$0xff]
  %v55 = vld [vmem:[%s0 + $0x128] sm:$0xff]
  %v56 = vld [vmem:[%s0 + $0x130] sm:$0x3]
  %v57 = vmul.f32 %v36, 0.125
  %v58 = vmul.f32 %v37, 0.125
  %v59 = vmul.f32 %v38, 0.125
  %v60 = vmul.f32 %v39, 0.125
  %v61 = vmul.f32 %v40, 0.125
  %v62 = vmul.f32 %v41, 0.125
  %v63 = vmul.f32 %v42, 0.125
  %v64 = vmul.f32 %v43, 0.125
  %v65 = vmul.f32 %v44, 0.125
  %v66 = vmul.f32 %v45, 0.125
  %v67 = vmul.f32 %v46, 0.125
  %v68 = vmul.f32 %v47, 0.125
  %v69 = vmul.f32 %v48, 0.125
  %v70 = vmul.f32 %v49, 0.125
  %v71 = vmul.f32 %v50, 0.125
  %v72 = vmul.f32 %v51, 0.125
  %v73 = vmul.f32 %v52, 0.125
  %v74 = vmul.f32 %v53, 0.125
  %v75 = vmul.f32 %v54, 0.125
  %v76 = vmul.f32 %v55, 0.125
  %v77 = vmul.f32 %v56, 0.125
  %s78 = scalar_lea.vmem %s0, 24
  %v79 = vld [vmem:[%s78] sm:$0xff]
  %v80 = vld [vmem:[%s78 + $0x8] sm:$0xff]
  %v81 = vld [vmem:[%s78 + $0x10] sm:$0x3]
  %v82 = vld [vmem:[%s78 + $0x30] sm:$0xff]
  %v83 = vld [vmem:[%s78 + $0x38] sm:$0xff]
  %v84 = vld [vmem:[%s78 + $0x40] sm:$0x3]
  %v85 = vld [vmem:[%s78 + $0x60] sm:$0xff]
  %v86 = vld [vmem:[%s78 + $0x68] sm:$0xff]
  %v87 = vld [vmem:[%s78 + $0x70] sm:$0x3]
  %v88 = vld [vmem:[%s78 + $0x90] sm:$0xff]
  %v89 = vld [vmem:[%s78 + $0x98] sm:$0xff]
  %v90 = vld [vmem:[%s78 + $0xa0] sm:$0x3]
  %v91 = vld [vmem:[%s78 + $0xc0] sm:$0xff]
  %v92 = vld [vmem:[%s78 + $0xc8] sm:$0xff]
  %v93 = vld [vmem:[%s78 + $0xd0] sm:$0x3]
  %v94 = vld [vmem:[%s78 + $0xf0] sm:$0xff]
  %v95 = vld [vmem:[%s78 + $0xf8] sm:$0xff]
  %v96 = vld [vmem:[%s78 + $0x100] sm:$0x3]
  %v97 = vld [vmem:[%s78 + $0x120] sm:$0xff]
  %v98 = vld [vmem:[%s78 + $0x128] sm:$0xff]
  %v99 = vld [vmem:[%s78 + $0x130] sm:$0x3]
  %v100 = vmul.f32 %v79, 0.375
  %v101 = vmul.f32 %v80, 0.375
  %v102 = vmul.f32 %v81, 0.375
  %v103 = vmul.f32 %v82, 0.375
  %v104 = vmul.f32 %v83, 0.375
  %v105 = vmul.f32 %v84, 0.375
  %v106 = vmul.f32 %v85, 0.375
  %v107 = vmul.f32 %v86, 0.375
  %v108 = vmul.f32 %v87, 0.375
  %v109 = vmul.f32 %v88, 0.375
  %v110 = vmul.f32 %v89, 0.375
  %v111 = vmul.f32 %v90, 0.375
  %v112 = vmul.f32 %v91, 0.375
  %v113 = vmul.f32 %v92, 0.375
  %v114 = vmul.f32 %v93, 0.375
  %v115 = vmul.f32 %v94, 0.375
  %v116 = vmul.f32 %v95, 0.375
  %v117 = vmul.f32 %v96, 0.375
  %v118 = vmul.f32 %v97, 0.375
  %v119 = vmul.f32 %v98, 0.375
  %v120 = vmul.f32 %v99, 0.375
  %v121 = vadd.f32 %v57, %v100
  %v122 = vadd.f32 %v58, %v101
  %v123 = vadd.f32 %v59, %v102
  %v124 = vadd.f32 %v60, %v103
  %v125 = vadd.f32 %v61, %v104
  %v126 = vadd.f32 %v62, %v105
  %v127 = vadd.f32 %v63, %v106
  %v128 = vadd.f32 %v64, %v107
  %v129 = vadd.f32 %v65, %v108
  %v130 = vadd.f32 %v66, %v109
  %v131 = vadd.f32 %v67, %v110
  %v132 = vadd.f32 %v68, %v111
  %v133 = vadd.f32 %v69, %v112
  %v134 = vadd.f32 %v70, %v113
  %v135 = vadd.f32 %v71, %v114
  %v136 = vadd.f32 %v72, %v115
  %v137 = vadd.f32 %v73, %v116
  %v138 = vadd.f32 %v74, %v117
  %v139 = vadd.f32 %v75, %v118
  %v140 = vadd.f32 %v76, %v119
  %v141 = vadd.f32 %v77, %v120
  %s142 = scalar_lea.vmem %s0, 48
  %v143 = vld [vmem:[%s142] sm:$0xff]
  %v144 = vld [vmem:[%s142 + $0x8] sm:$0xff]
  %v145 = vld [vmem:[%s142 + $0x10] sm:$0x3]
  %v146 = vld [vmem:[%s142 + $0x30] sm:$0xff]
  %v147 = vld [vmem:[%s142 + $0x38] sm:$0xff]
  %v148 = vld [vmem:[%s142 + $0x40] sm:$0x3]
  %v149 = vld [vmem:[%s142 + $0x60] sm:$0xff]
  %v150 = vld [vmem:[%s142 + $0x68] sm:$0xff]
  %v151 = vld [vmem:[%s142 + $0x70] sm:$0x3]
  %v152 = vld [vmem:[%s142 + $0x90] sm:$0xff]
  %v153 = vld [vmem:[%s142 + $0x98] sm:$0xff]
  %v154 = vld [vmem:[%s142 + $0xa0] sm:$0x3]
  %v155 = vld [vmem:[%s142 + $0xc0] sm:$0xff]
  %v156 = vld [vmem:[%s142 + $0xc8] sm:$0xff]
  %v157 = vld [vmem:[%s142 + $0xd0] sm:$0x3]
  %v158 = vld [vmem:[%s142 + $0xf0] sm:$0xff]
  %v159 = vld [vmem:[%s142 + $0xf8] sm:$0xff]
  %v160 = vld [vmem:[%s142 + $0x100] sm:$0x3]
  %v161 = vld [vmem:[%s142 + $0x120] sm:$0xff]
  %v162 = vld [vmem:[%s142 + $0x128] sm:$0xff]
  %v163 = vld [vmem:[%s142 + $0x130] sm:$0x3]
  %v164 = vmul.f32 %v143, 0.375
  %v165 = vmul.f32 %v144, 0.375
  %v166 = vmul.f32 %v145, 0.375
  %v167 = vmul.f32 %v146, 0.375
  %v168 = vmul.f32 %v147, 0.375
  %v169 = vmul.f32 %v148, 0.375
  %v170 = vmul.f32 %v149, 0.375
  %v171 = vmul.f32 %v150, 0.375
  %v172 = vmul.f32 %v151, 0.375
  %v173 = vmul.f32 %v152, 0.375
  %v174 = vmul.f32 %v153, 0.375
  %v175 = vmul.f32 %v154, 0.375
  %v176 = vmul.f32 %v155, 0.375
  %v177 = vmul.f32 %v156, 0.375
  %v178 = vmul.f32 %v157, 0.375
  %v179 = vmul.f32 %v158, 0.375
  %v180 = vmul.f32 %v159, 0.375
  %v181 = vmul.f32 %v160, 0.375
  %v182 = vmul.f32 %v161, 0.375
  %v183 = vmul.f32 %v162, 0.375
  %v184 = vmul.f32 %v163, 0.375
  %v185 = vadd.f32 %v121, %v164
  %v186 = vadd.f32 %v122, %v165
  %v187 = vadd.f32 %v123, %v166
  %v188 = vadd.f32 %v124, %v167
  %v189 = vadd.f32 %v125, %v168
  %v190 = vadd.f32 %v126, %v169
  %v191 = vadd.f32 %v127, %v170
  %v192 = vadd.f32 %v128, %v171
  %v193 = vadd.f32 %v129, %v172
  %v194 = vadd.f32 %v130, %v173
  %v195 = vadd.f32 %v131, %v174
  %v196 = vadd.f32 %v132, %v175
  %v197 = vadd.f32 %v133, %v176
  %v198 = vadd.f32 %v134, %v177
  %v199 = vadd.f32 %v135, %v178
  %v200 = vadd.f32 %v136, %v179
  %v201 = vadd.f32 %v137, %v180
  %v202 = vadd.f32 %v138, %v181
  %v203 = vadd.f32 %v139, %v182
  %v204 = vadd.f32 %v140, %v183
  %v205 = vadd.f32 %v141, %v184
  %s206 = scalar_lea.vmem %s0, 72
  %v207 = vld [vmem:[%s206] sm:$0xff]
  %v208 = vld [vmem:[%s206 + $0x8] sm:$0xff]
  %v209 = vld [vmem:[%s206 + $0x10] sm:$0x3]
  %v210 = vld [vmem:[%s206 + $0x30] sm:$0xff]
  %v211 = vld [vmem:[%s206 + $0x38] sm:$0xff]
  %v212 = vld [vmem:[%s206 + $0x40] sm:$0x3]
  %v213 = vld [vmem:[%s206 + $0x60] sm:$0xff]
  %v214 = vld [vmem:[%s206 + $0x68] sm:$0xff]
  %v215 = vld [vmem:[%s206 + $0x70] sm:$0x3]
  %v216 = vld [vmem:[%s206 + $0x90] sm:$0xff]
  %v217 = vld [vmem:[%s206 + $0x98] sm:$0xff]
  %v218 = vld [vmem:[%s206 + $0xa0] sm:$0x3]
  %v219 = vld [vmem:[%s206 + $0xc0] sm:$0xff]
  %v220 = vld [vmem:[%s206 + $0xc8] sm:$0xff]
  %v221 = vld [vmem:[%s206 + $0xd0] sm:$0x3]
  %v222 = vld [vmem:[%s206 + $0xf0] sm:$0xff]
  %v223 = vld [vmem:[%s206 + $0xf8] sm:$0xff]
  %v224 = vld [vmem:[%s206 + $0x100] sm:$0x3]
  %v225 = vld [vmem:[%s206 + $0x120] sm:$0xff]
  %v226 = vld [vmem:[%s206 + $0x128] sm:$0xff]
  %v227 = vld [vmem:[%s206 + $0x130] sm:$0x3]
  %v228 = vmul.f32 %v207, 0.125
  %v229 = vmul.f32 %v208, 0.125
  %v230 = vmul.f32 %v209, 0.125
  %v231 = vmul.f32 %v210, 0.125
  %v232 = vmul.f32 %v211, 0.125
  %v233 = vmul.f32 %v212, 0.125
  %v234 = vmul.f32 %v213, 0.125
  %v235 = vmul.f32 %v214, 0.125
  %v236 = vmul.f32 %v215, 0.125
  %v237 = vmul.f32 %v216, 0.125
  %v238 = vmul.f32 %v217, 0.125
  %v239 = vmul.f32 %v218, 0.125
  %v240 = vmul.f32 %v219, 0.125
  %v241 = vmul.f32 %v220, 0.125
  %v242 = vmul.f32 %v221, 0.125
  %v243 = vmul.f32 %v222, 0.125
  %v244 = vmul.f32 %v223, 0.125
  %v245 = vmul.f32 %v224, 0.125
  %v246 = vmul.f32 %v225, 0.125
  %v247 = vmul.f32 %v226, 0.125
  %v248 = vmul.f32 %v227, 0.125
  %v249 = vadd.f32 %v185, %v228
  %v250 = vadd.f32 %v186, %v229
  %v251 = vadd.f32 %v187, %v230
  %v252 = vadd.f32 %v188, %v231
  %v253 = vadd.f32 %v189, %v232
  %v254 = vadd.f32 %v190, %v233
  %v255 = vadd.f32 %v191, %v234
  %v256 = vadd.f32 %v192, %v235
  %v257 = vadd.f32 %v193, %v236
  %v258 = vadd.f32 %v194, %v237
  %v259 = vadd.f32 %v195, %v238
  %v260 = vadd.f32 %v196, %v239
  %v261 = vadd.f32 %v197, %v240
  %v262 = vadd.f32 %v198, %v241
  %v263 = vadd.f32 %v199, %v242
  %v264 = vadd.f32 %v200, %v243
  %v265 = vadd.f32 %v201, %v244
  %v266 = vadd.f32 %v202, %v245
  %v267 = vadd.f32 %v203, %v246
  %v268 = vadd.f32 %v204, %v247
  %v269 = vadd.f32 %v205, %v248
  %vm270 = vcmask 64512
  %271 = vst.msk [vmem:[#allocation2] sm:$0xff] %vm270, %v249
  %272 = vst.msk [vmem:[#allocation2 + $0x8] sm:$0xff] %vm270, %v250
  %vm273 = vcmask 58368
  %274 = vst.msk [vmem:[#allocation2 + $0x10] sm:$0x3] %vm273, %v251
  %275 = vst.msk [vmem:[#allocation2 + $0x18] sm:$0xff] %vm270, %v252
  %276 = vst.msk [vmem:[#allocation2 + $0x20] sm:$0xff] %vm270, %v253
  %277 = vst.msk [vmem:[#allocation2 + $0x28] sm:$0x3] %vm273, %v254
  %278 = vst.msk [vmem:[#allocation2 + $0x30] sm:$0xff] %vm270, %v255
  %279 = vst.msk [vmem:[#allocation2 + $0x38] sm:$0xff] %vm270, %v256
  %280 = vst.msk [vmem:[#allocation2 + $0x40] sm:$0x3] %vm273, %v257
  %281 = vst.msk [vmem:[#allocation2 + $0x48] sm:$0xff] %vm270, %v258
  %282 = vst.msk [vmem:[#allocation2 + $0x50] sm:$0xff] %vm270, %v259
  %283 = vst.msk [vmem:[#allocation2 + $0x58] sm:$0x3] %vm273, %v260
  %284 = vst.msk [vmem:[#allocation2 + $0x60] sm:$0xff] %vm270, %v261
  %285 = vst.msk [vmem:[#allocation2 + $0x68] sm:$0xff] %vm270, %v262
  %286 = vst.msk [vmem:[#allocation2 + $0x70] sm:$0x3] %vm273, %v263
  %287 = vst.msk [vmem:[#allocation2 + $0x78] sm:$0xff] %vm270, %v264
  %288 = vst.msk [vmem:[#allocation2 + $0x80] sm:$0xff] %vm270, %v265
  %289 = vst.msk [vmem:[#allocation2 + $0x88] sm:$0x3] %vm273, %v266
  %290 = vst.msk [vmem:[#allocation2 + $0x90] sm:$0xff] %vm270, %v267
  %291 = vst.msk [vmem:[#allocation2 + $0x98] sm:$0xff] %vm270, %v268
  %292 = vst.msk [vmem:[#allocation2 + $0xa0] sm:$0x3] %vm273, %v269
  %s293 = scalar_lea.vmem %s0, 336
  %v294 = vld [vmem:[%s293] sm:$0xff]
  %v295 = vld [vmem:[%s293 + $0x8] sm:$0xff]
  %v296 = vld [vmem:[%s293 + $0x10] sm:$0x3]
  %v297 = vmul.f32 %v294, 0.125
  %v298 = vmul.f32 %v295, 0.125
  %v299 = vmul.f32 %v296, 0.125
  %s300 = scalar_lea.vmem %s0, 360
  %v301 = vld [vmem:[%s300] sm:$0xff]
  %v302 = vld [vmem:[%s300 + $0x8] sm:$0xff]
  %v303 = vld [vmem:[%s300 + $0x10] sm:$0x3]
  %v304 = vmul.f32 %v301, 0.375
  %v305 = vmul.f32 %v302, 0.375
  %v306 = vmul.f32 %v303, 0.375
  %v307 = vadd.f32 %v297, %v304
  %v308 = vadd.f32 %v298, %v305
  %v309 = vadd.f32 %v299, %v306
  %v310 = vld [vmem:[%s33] sm:$0xff]
  %v311 = vld [vmem:[%s33 + $0x8] sm:$0xff]
  %v312 = vld [vmem:[%s33 + $0x10] sm:$0x3]
  %v313 = vmul.f32 %v310, 0.375
  %v314 = vmul.f32 %v311, 0.375
  %v315 = vmul.f32 %v312, 0.375
  %v316 = vadd.f32 %v307, %v313
  %v317 = vadd.f32 %v308, %v314
  %v318 = vadd.f32 %v309, %v315
  %s319 = scalar_lea.vmem %s33, 24
  %v320 = vld [vmem:[%s319] sm:$0xff]
  %v321 = vld [vmem:[%s319 + $0x8] sm:$0xff]
  %v322 = vld [vmem:[%s319 + $0x10] sm:$0x3]
  %v323 = vmul.f32 %v320, 0.125
  %v324 = vmul.f32 %v321, 0.125
  %v325 = vmul.f32 %v322, 0.125
  %v326 = vadd.f32 %v316, %v323
  %v327 = vadd.f32 %v317, %v324
  %v328 = vadd.f32 %v318, %v325
  %s329 = scalar_lea.vmem [#allocation2], 168
  %330 = vst.msk [vmem:[%s329] sm:$0xff] %vm270, %v326
  %331 = vst.msk [vmem:[%s329 + $0x8] sm:$0xff] %vm270, %v327
  %332 = vst.msk [vmem:[%s329 + $0x10] sm:$0x3] %vm273, %v328
  %v333 = vld [vmem:[#allocation2] ss:$2 sm:$0xff]
  %s334 = scalar_lea.vmem [#allocation2], 24
  %v335 = vld [vmem:[%s334] ss:$2 sm:$0xff]
  %s336 = scalar_lea.vmem [#allocation2], 48
  %v337 = vld [vmem:[%s336] ss:$2 sm:$0xff]
  %s338 = scalar_lea.vmem [#allocation2], 72
  %v339 = vld [vmem:[%s338] ss:$2 sm:$0xff]
  %s340 = scalar_lea.vmem [#allocation2], 96
  %v341 = vld [vmem:[%s340] ss:$2 sm:$0xff]
  %s342 = scalar_lea.vmem [#allocation2], 120
  %v343 = vld [vmem:[%s342] ss:$2 sm:$0xff]
  %s344 = scalar_lea.vmem [#allocation2], 144
  %v345 = vld [vmem:[%s344] ss:$2 sm:$0xff]
  %s346 = scalar_lea.vmem [#allocation2], 168
  %v347 = vld [vmem:[%s346] ss:$2 sm:$0xff]
  %v348 = vmul.f32 %v333, 0.125
  %v349 = vmul.f32 %v335, 0.125
  %v350 = vmul.f32 %v337, 0.125
  %v351 = vmul.f32 %v339, 0.125
  %v352 = vmul.f32 %v341, 0.125
  %v353 = vmul.f32 %v343, 0.125
  %v354 = vmul.f32 %v345, 0.125
  %v355 = vmul.f32 %v347, 0.125
  %s356 = scalar_lea.vmem [#allocation2], 1
  %v357 = vld [vmem:[%s356] ss:$2 sm:$0xff]
  %s358 = scalar_lea.vmem [#allocation2], 25
  %v359 = vld [vmem:[%s358] ss:$2 sm:$0xff]
  %s360 = scalar_lea.vmem [#allocation2], 49
  %v361 = vld [vmem:[%s360] ss:$2 sm:$0xff]
  %s362 = scalar_lea.vmem [#allocation2], 73
  %v363 = vld [vmem:[%s362] ss:$2 sm:$0xff]
  %s364 = scalar_lea.vmem [#allocation2], 97
  %v365 = vld [vmem:[%s364] ss:$2 sm:$0xff]
  %s366 = scalar_lea.vmem [#allocation2], 121
  %v367 = vld [vmem:[%s366] ss:$2 sm:$0xff]
  %s368 = scalar_lea.vmem [#allocation2], 145
  %v369 = vld [vmem:[%s368] ss:$2 sm:$0xff]
  %s370 = scalar_lea.vmem [#allocation2], 169
  %v371 = vld [vmem:[%s370] ss:$2 sm:$0xff]
  %v372 = vmul.f32 %v357, 0.375
  %v373 = vmul.f32 %v359, 0.375
  %v374 = vmul.f32 %v361, 0.375
  %v375 = vmul.f32 %v363, 0.375
  %v376 = vmul.f32 %v365, 0.375
  %v377 = vmul.f32 %v367, 0.375
  %v378 = vmul.f32 %v369, 0.375
  %v379 = vmul.f32 %v371, 0.375
  %v380 = vadd.f32 %v348, %v372
  %v381 = vadd.f32 %v349, %v373
  %v382 = vadd.f32 %v350, %v374
  %v383 = vadd.f32 %v351, %v375
  %v384 = vadd.f32 %v352, %v376
  %v385 = vadd.f32 %v353, %v377
  %v386 = vadd.f32 %v354, %v378
  %v387 = vadd.f32 %v355, %v379
  %s388 = scalar_lea.vmem [#allocation2], 2
  %v389 = vld [vmem:[%s388] ss:$2 sm:$0xff]
  %s390 = scalar_lea.vmem [#allocation2], 26
  %v391 = vld [vmem:[%s390] ss:$2 sm:$0xff]
  %s392 = scalar_lea.vmem [#allocation2], 50
  %v393 = vld [vmem:[%s392] ss:$2 sm:$0xff]
  %s394 = scalar_lea.vmem [#allocation2], 74
  %v395 = vld [vmem:[%s394] ss:$2 sm:$0xff]
  %s396 = scalar_lea.vmem [#allocation2], 98
  %v397 = vld [vmem:[%s396] ss:$2 sm:$0xff]
  %s398 = scalar_lea.vmem [#allocation2], 122
  %v399 = vld [vmem:[%s398] ss:$2 sm:$0xff]
  %s400 = scalar_lea.vmem [#allocation2], 146
  %v401 = vld [vmem:[%s400] ss:$2 sm:$0xff]
  %s402 = scalar_lea.vmem [#allocation2], 170
  %v403 = vld [vmem:[%s402] ss:$2 sm:$0xff]
  %v404 = vmul.f32 %v389, 0.375
  %v405 = vmul.f32 %v391, 0.375
  %v406 = vmul.f32 %v393, 0.375
  %v407 = vmul.f32 %v395, 0.375
  %v408 = vmul.f32 %v397, 0.375
  %v409 = vmul.f32 %v399, 0.375
  %v410 = vmul.f32 %v401, 0.375
  %v411 = vmul.f32 %v403, 0.375
  %v412 = vadd.f32 %v380, %v404
  %v413 = vadd.f32 %v381, %v405
  %v414 = vadd.f32 %v382, %v406
  %v415 = vadd.f32 %v383, %v407
  %v416 = vadd.f32 %v384, %v408
  %v417 = vadd.f32 %v385, %v409
  %v418 = vadd.f32 %v386, %v410
  %v419 = vadd.f32 %v387, %v411
  %s420 = scalar_lea.vmem [#allocation2], 3
  %v421 = vld [vmem:[%s420] ss:$2 sm:$0xff]
  %s422 = scalar_lea.vmem [#allocation2], 27
  %v423 = vld [vmem:[%s422] ss:$2 sm:$0xff]
  %s424 = scalar_lea.vmem [#allocation2], 51
  %v425 = vld [vmem:[%s424] ss:$2 sm:$0xff]
  %s426 = scalar_lea.vmem [#allocation2], 75
  %v427 = vld [vmem:[%s426] ss:$2 sm:$0xff]
  %s428 = scalar_lea.vmem [#allocation2], 99
  %v429 = vld [vmem:[%s428] ss:$2 sm:$0xff]
  %s430 = scalar_lea.vmem [#allocation2], 123
  %v431 = vld [vmem:[%s430] ss:$2 sm:$0xff]
  %s432 = scalar_lea.vmem [#allocation2], 147
  %v433 = vld [vmem:[%s432] ss:$2 sm:$0xff]
  %s434 = scalar_lea.vmem [#allocation2], 171
  %v435 = vld [vmem:[%s434] ss:$2 sm:$0xff]
  %v436 = vmul.f32 %v421, 0.125
  %v437 = vmul.f32 %v423, 0.125
  %v438 = vmul.f32 %v425, 0.125
  %v439 = vmul.f32 %v427, 0.125
  %v440 = vmul.f32 %v429, 0.125
  %v441 = vmul.f32 %v431, 0.125
  %v442 = vmul.f32 %v433, 0.125
  %v443 = vmul.f32 %v435, 0.125
  %v444 = vadd.f32 %v412, %v436
  %v445 = vadd.f32 %v413, %v437
  %v446 = vadd.f32 %v414, %v438
  %v447 = vadd.f32 %v415, %v439
  %v448 = vadd.f32 %v416, %v440
  %v449 = vadd.f32 %v417, %v441
  %v450 = vadd.f32 %v418, %v442
  %v451 = vadd.f32 %v419, %v443
  %452 = vst.msk [vmem:[%s2] sm:$0xff] %vm270, %v444
  %453 = vst.msk [vmem:[%s2 + $0x8] sm:$0xff] %vm270, %v445
  %454 = vst.msk [vmem:[%s2 + $0x10] sm:$0xff] %vm270, %v446
  %455 = vst.msk [vmem:[%s2 + $0x18] sm:$0xff] %vm270, %v447
  %456 = vst.msk [vmem:[%s2 + $0x20] sm:$0xff] %vm270, %v448
  %457 = vst.msk [vmem:[%s2 + $0x28] sm:$0xff] %vm270, %v449
  %458 = vst.msk [vmem:[%s2 + $0x30] sm:$0xff] %vm270, %v450
  %459 = vst.msk [vmem:[%s2 + $0x38] sm:$0xff] %vm270, %v451
  // Predicated region
  $region10: #{_downsample_pallas.1} parent=0 // pred_check
    _
  $region11: #{_downsample_pallas.1} parent=0 // pred_check_branch
    %461 = sbr.rel (0) target = $region13
  $region12: #{_downsample_pallas.1} parent=0 // pred_region
    _
  $region13: #{_downsample_pallas.1} parent=0 // pred_fallthru
    _
  // Predicated region
  $region14: #{_downsample_pallas.1} parent=0 // pred_check
    _
  $region15: #{_downsample_pallas.1} parent=0 // pred_check_branch
    %463 = sbr.rel (0) target = $region17
  $region16: #{_downsample_pallas.1} parent=0 // pred_region
    _
  $region17: #{_downsample_pallas.1} parent=0 // pred_fallthru
    _

</llo_original>
